<compile_context>
chip_gen: v6e
topology: v6e:2x2x1
jax: 0.10.0
libtpu: 0.0.40
codegen_flags: <defaults>
</compile_context>

<pallas_src>
import jax
import jax.numpy as jnp
from jax.experimental import pallas as pl
from jax.experimental.pallas import tpu as pltpu


# ----------------------------- model dims -----------------------------------
INPUT_SIZE = 4
HIDDEN = 32
FC1_OUT = 128
OUTPUT_DIM = 1

# ------------------------- packed-layout constants --------------------------
I_PAD = 8                 # input features 4 -> 8 (sublane-aligned MXU K dim)
GATES = 128               # 3*HIDDEN = 96 gate lanes, padded to one full vreg
B_SUB = 8                 # f32 sublane multiple for the batch dim

# Single parameter slab: rows 0..47 GRU section, rows 48..87 MLP section.
_WI_R0 = 0                          # rows [0, I_PAD): input->gate weights [W_ir|W_iz|W_in]
_BIAS_WI_ROW = INPUT_SIZE           # row 4: bias0 = [b_ir+b_hr | b_iz+b_hz | b_in | 0]
#                                     (paired with the constant-1 input column)
_WH_R0 = I_PAD                      # rows [8, 8+H): hidden->gate weights [W_hr|W_hz|W_hn]
_BHN_ROW = I_PAD + HIDDEN           # row 40: [0 | 0 | b_hn | 0]
_MLP_R0 = 48                        # rows [48, 48+H): fc_1 weight (H, 128)
_FC1B_ROW = _MLP_R0 + HIDDEN        # row 80: fc_1 bias
_FCW_ROW = _FC1B_ROW + 1            # row 81: fc weight as a (1, 128) row
_FCB_ROW = _FCW_ROW + 1             # row 82: fc bias in lane 0
PACK_ROWS = 88                      # 48 + 40, multiple of 8 sublanes


# ------------------------------- kernel --------------------------------------
def _gru_mlp_kernel(x_ref,      # (T*Bp, I_PAD) time-major, flattened; col 4 == 1.0 (bias)
                    p_ref,      # (88, 128)     packed GRU + MLP weights/biases
                    out_ref):   # (Bp, 1)
    H = HIDDEN
    Bp = out_ref.shape[0]                # padded batch (multiple of 8)
    T = x_ref.shape[0] // Bp

    p = p_ref[...]
    w_i = p[_WI_R0:_WI_R0 + I_PAD, :]                    # (I_PAD, 128) incl. bias0 row
    w_h = p[_WH_R0:_WH_R0 + H, :]                        # (H, 128) [W_hr|W_hz|W_hn]
    b_hn = p[_BHN_ROW:_BHN_ROW + 1, 2 * H:3 * H]         # (1, H)

    # Hoisted input projection over ALL timesteps in one MXU pass.  The constant-1
    # column of x pairs with the bias0 row of w_i, so biases ride the matmul for free.
    # Lanes: [0:H)=r, [H:2H)=z, [2H:3H)=n.
    x_proj = jnp.dot(x_ref[...], w_i,
                     preferred_element_type=jnp.float32)                 # (T*Bp, 128)

    # Loop-invariant broadcast hoisted (JAX does not CSE broadcast_in_dim).
    b_hn_b = jnp.broadcast_to(b_hn, (Bp, H))

    # Recurrence: T is a trace-time constant -> fully unrolled; w_h is loop-invariant
    # so the MXU RHS can stay staged across the 8 steps.
    h = jnp.zeros((Bp, H), jnp.float32)
    for t in range(T):
        xp = x_proj[t * Bp:(t + 1) * Bp, :]                               # (Bp, 128)
        hg = jnp.dot(h, w_h, preferred_element_type=jnp.float32)         # (Bp, 128)
        g = xp + hg
        rz = jax.nn.sigmoid(g[:, 0:2 * H])       # one EUP push covers r and z
        r = rz[:, 0:H]
        z = rz[:, H:2 * H]
        # NOTE: r (lanes 0:H) gates hg_n (lanes 2H:3H); sub-vreg lane relayout is
        # handled by the compiler and sits under MXU/EUP latency at these sizes.
        n = jnp.tanh(xp[:, 2 * H:3 * H] + r * (hg[:, 2 * H:3 * H] + b_hn_b))
        h = (1.0 - z) * n + z * h                                         # (Bp, H)

    # MLP head: relu -> fc_1 -> relu -> fc
    fc1_w = p[_MLP_R0:_MLP_R0 + H, :]             # (H, 128)
    fc1_b = p[_FC1B_ROW:_FC1B_ROW + 1, :]         # (1, 128)
    fc_w = p[_FCW_ROW:_FCW_ROW + 1, :]            # (1, 128)
    fc_b = p[_FCB_ROW:_FCB_ROW + 1, 0:1]          # (1, 1)

    h_act = jnp.maximum(h, 0.0)
    hid = jnp.dot(h_act, fc1_w, preferred_element_type=jnp.float32) + fc1_b
    hid = jnp.maximum(hid, 0.0)
    # N=1 MXU matmul replaced with VPU multiply + lane reduction.
    out = jnp.sum(hid * fc_w, axis=-1, keepdims=True) + fc_b
    out_ref[...] = out                            # (Bp, 1)


# ------------------------------- wrapper --------------------------------------
def gru_net_forward(x, param_pack):
    """x: (B, T, input_size) float32, batch-first (PyTorch convention)."""
    B, T, I = x.shape
    Bp = max(B_SUB, ((B + B_SUB - 1) // B_SUB) * B_SUB)

    # Time-major, batch padded to 8 sublanes, feature column I set to 1.0 so the
    # fused GRU biases ride the hoisted input matmul, remaining columns zero.
    x_tb = jnp.transpose(x, (1, 0, 2))                                  # (T, B, I)
    x_tb = jnp.pad(x_tb, ((0, 0), (0, Bp - B), (0, 0)))                 # (T, Bp, I)
    ones = jnp.ones((T, Bp, 1), jnp.float32)
    zeros = jnp.zeros((T, Bp, I_PAD - I - 1), jnp.float32)
    x2d = jnp.concatenate([x_tb, ones, zeros], axis=-1).reshape(T * Bp, I_PAD)

    vmem = pl.BlockSpec(memory_space=pltpu.MemorySpace.VMEM)
    out = pl.pallas_call(
        _gru_mlp_kernel,
        out_shape=jax.ShapeDtypeStruct((Bp, 1), jnp.float32),
        in_specs=[vmem, vmem],
        out_specs=vmem,
        compiler_params=pltpu.CompilerParams(
            # Let the wrapper transpose/pad/ones-column fuse into the x operand.
            allow_input_fusion=[True, False]),
    )(x2d, param_pack)
    return out[:B]                                # (B, 1) == out.view(-1, 1)


# --------------------------- parameter handling -------------------------------
def init_params(key, input_size=INPUT_SIZE, hidden_size=HIDDEN,
                fc1_out=FC1_OUT, output_dim=OUTPUT_DIM):
    """Deterministic synthetic parameters matching nn.GRU / nn.Linear shapes.

    PyTorch stores weight_ih_l0 as (3H, I) with gate order [r, z, n]; here each
    gate is a separate, pre-transposed matrix (loading real torch weights just
    means slicing in [r, z, n] order and transposing).
    """
    ks = jax.random.split(key, 16)
    s_gru = 1.0 / jnp.sqrt(hidden_size)
    s_fc1 = 1.0 / jnp.sqrt(hidden_size)
    s_fc = 1.0 / jnp.sqrt(fc1_out)

    def u(k, shape, s):
        return jax.random.uniform(k, shape, jnp.float32, -s, s)

    return {
        "w_ir": u(ks[0], (input_size, hidden_size), s_gru),
        "w_iz": u(ks[1], (input_size, hidden_size), s_gru),
        "w_in": u(ks[2], (input_size, hidden_size), s_gru),
        "w_hr": u(ks[3], (hidden_size, hidden_size), s_gru),
        "w_hz": u(ks[4], (hidden_size, hidden_size), s_gru),
        "w_hn": u(ks[5], (hidden_size, hidden_size), s_gru),
        "b_ir": u(ks[6], (1, hidden_size), s_gru),
        "b_iz": u(ks[7], (1, hidden_size), s_gru),
        "b_in": u(ks[8], (1, hidden_size), s_gru),
        "b_hr": u(ks[9], (1, hidden_size), s_gru),
        "b_hz": u(ks[10], (1, hidden_size), s_gru),
        "b_hn": u(ks[11], (1, hidden_size), s_gru),
        "fc1_w": u(ks[12], (hidden_size, fc1_out), s_fc1),   # (H, 128)
        "fc1_b": u(ks[13], (1, fc1_out), s_fc1),
        "fc_w": u(ks[14], (fc1_out, output_dim), s_fc),      # (128, 1)
        "fc_b": u(ks[15], (1, output_dim), s_fc),
    }


def pack_params(params):
    """Pack everything into one lane-dense (88, 128) slab (done once, outside kernel)."""
    H = HIDDEN
    I = params["w_ir"].shape[0]
    w_i = jnp.concatenate([params["w_ir"], params["w_iz"], params["w_in"]], axis=1)   # (I, 3H)
    w_h = jnp.concatenate([params["w_hr"], params["w_hz"], params["w_hn"]], axis=1)   # (H, 3H)
    # r/z input+hidden biases pre-summed; b_in rides with the input projection;
    # only b_hn stays separate (it sits inside the r * (...) term).
    bias0 = jnp.concatenate([params["b_ir"] + params["b_hr"],
                             params["b_iz"] + params["b_hz"],
                             params["b_in"]], axis=1)                                  # (1, 3H)

    def pad_lanes(a):
        return jnp.pad(a, ((0, 0), (0, GATES - a.shape[1])))

    pack = jnp.zeros((PACK_ROWS, GATES), jnp.float32)
    pack = pack.at[_WI_R0:_WI_R0 + I, :].set(pad_lanes(w_i))
    pack = pack.at[_BIAS_WI_ROW, :].set(pad_lanes(bias0)[0])       # pairs with the 1.0 column
    pack = pack.at[_WH_R0:_WH_R0 + H, :].set(pad_lanes(w_h))
    pack = pack.at[_BHN_ROW, 2 * H:3 * H].set(params["b_hn"][0])
    pack = pack.at[_MLP_R0:_MLP_R0 + H, :].set(params["fc1_w"])
    pack = pack.at[_FC1B_ROW, :].set(params["fc1_b"][0])
    pack = pack.at[_FCW_ROW, :].set(params["fc_w"][:, 0])
    pack = pack.at[_FCB_ROW, 0].set(params["fc_b"][0, 0])
    return pack


# ------------------------------ pure-JAX reference ----------------------------
def _reference_forward(x, params):
    hp = jax.lax.Precision.HIGHEST
    B, T, _ = x.shape
    h = jnp.zeros((B, HIDDEN), jnp.float32)
    for t in range(T):
        xt = x[:, t, :]
        r = jax.nn.sigmoid(jnp.dot(xt, params["w_ir"], precision=hp) + params["b_ir"]
                           + jnp.dot(h, params["w_hr"], precision=hp) + params["b_hr"])
        z = jax.nn.sigmoid(jnp.dot(xt, params["w_iz"], precision=hp) + params["b_iz"]
                           + jnp.dot(h, params["w_hz"], precision=hp) + params["b_hz"])
        n = jnp.tanh(jnp.dot(xt, params["w_in"], precision=hp) + params["b_in"]
                     + r * (jnp.dot(h, params["w_hn"], precision=hp) + params["b_hn"]))
        h = (1.0 - z) * n + z * h
    out = jnp.maximum(h, 0.0)
    out = jnp.maximum(jnp.dot(out, params["fc1_w"], precision=hp) + params["fc1_b"], 0.0)
    out = jnp.dot(out, params["fc_w"], precision=hp) + params["fc_b"]
    return out.reshape(-1, 1)


# ----------------------------------- main --------------------------------------
if __name__ == "__main__":
    key = jax.random.PRNGKey(0)
    k_x, k_p = jax.random.split(key)

    batch, seq, input_size, hidden = 2, 8, 4, 32
    x = jax.random.normal(k_x, (batch, seq, input_size), jnp.float32)
    params = init_params(k_p, input_size=input_size, hidden_size=hidden)
    param_pack = pack_params(params)

    out = jax.jit(gru_net_forward)(x, param_pack)
    jax.block_until_ready(out)
    assert out.shape == (batch, 1) and out.dtype == jnp.float32

    ref = _reference_forward(x, params)
    assert jnp.allclose(out, ref, atol=2e-3, rtol=2e-3), (out, ref)

    print("KERNEL_OK")
</pallas_src>

<mosaic_0001>
module attributes {stable_mosaic.version = 11 : i64} {
  func.func @_gru_mlp_kernel(%arg0: memref<64x8xf32, #tpu.memory_space<vmem>>, %arg1: memref<88x128xf32, #tpu.memory_space<vmem>>, %arg2: memref<8x1xf32, #tpu.memory_space<vmem>>) attributes {dimension_semantics = [], scalar_prefetch = 0 : i64, scratch_operands = 0 : i64, tpu.core_type = #tpu.core_type<tc>} {
    %c0 = arith.constant 0 : index
    %c0_0 = arith.constant 0 : index
    %0 = vector.load %arg1[%c0, %c0_0] : memref<88x128xf32, #tpu.memory_space<vmem>>, vector<88x128xf32>
    %1 = vector.extract_strided_slice %0 {offsets = [0, 0], sizes = [8, 128], strides = [1, 1]} : vector<88x128xf32> to vector<8x128xf32>
    %2 = vector.extract_strided_slice %0 {offsets = [8, 0], sizes = [32, 128], strides = [1, 1]} : vector<88x128xf32> to vector<32x128xf32>
    %3 = vector.extract_strided_slice %0 {offsets = [40, 64], sizes = [1, 32], strides = [1, 1]} : vector<88x128xf32> to vector<1x32xf32>
    %c0_1 = arith.constant 0 : index
    %c0_2 = arith.constant 0 : index
    %4 = vector.load %arg0[%c0_1, %c0_2] : memref<64x8xf32, #tpu.memory_space<vmem>>, vector<64x8xf32>
    %cst = arith.constant dense<0.000000e+00> : vector<64x128xf32>
    %5 = tpu.matmul %4, %1, %cst {dimension_numbers = #tpu.dot_dimension_numbers<[1], [0], [0], [1], [0, 0, 1, 1], [], []>} : vector<64x8xf32>, vector<8x128xf32>, vector<64x128xf32> -> vector<64x128xf32>
    %6 = vector.shape_cast %3 : vector<1x32xf32> to vector<1x32xf32>
    %7 = vector.broadcast %6 : vector<1x32xf32> to vector<8x32xf32>
    %cst_3 = arith.constant 0.000000e+00 : f32
    %8 = vector.broadcast %cst_3 : f32 to vector<8x32xf32>
    %9 = vector.extract_strided_slice %5 {offsets = [0, 0], sizes = [8, 128], strides = [1, 1]} : vector<64x128xf32> to vector<8x128xf32>
    %cst_4 = arith.constant dense<0.000000e+00> : vector<8x128xf32>
    %10 = tpu.matmul %8, %2, %cst_4 {dimension_numbers = #tpu.dot_dimension_numbers<[1], [0], [0], [1], [0, 0, 1, 1], [], []>} : vector<8x32xf32>, vector<32x128xf32>, vector<8x128xf32> -> vector<8x128xf32>
    %11 = arith.addf %9, %10 : vector<8x128xf32>
    %12 = vector.extract_strided_slice %11 {offsets = [0, 0], sizes = [8, 64], strides = [1, 1]} : vector<8x128xf32> to vector<8x64xf32>
    %13 = arith.negf %12 : vector<8x64xf32>
    %14 = math.exp %13 : vector<8x64xf32>
    %cst_5 = arith.constant 1.000000e+00 : f32
    %15 = vector.broadcast %cst_5 : f32 to vector<8x64xf32>
    %16 = arith.addf %15, %14 : vector<8x64xf32>
    %17 = arith.divf %15, %16 : vector<8x64xf32>
    %18 = vector.extract_strided_slice %17 {offsets = [0, 0], sizes = [8, 32], strides = [1, 1]} : vector<8x64xf32> to vector<8x32xf32>
    %19 = vector.extract_strided_slice %17 {offsets = [0, 32], sizes = [8, 32], strides = [1, 1]} : vector<8x64xf32> to vector<8x32xf32>
    %20 = vector.extract_strided_slice %9 {offsets = [0, 64], sizes = [8, 32], strides = [1, 1]} : vector<8x128xf32> to vector<8x32xf32>
    %21 = vector.extract_strided_slice %10 {offsets = [0, 64], sizes = [8, 32], strides = [1, 1]} : vector<8x128xf32> to vector<8x32xf32>
    %22 = arith.addf %21, %7 : vector<8x32xf32>
    %23 = arith.mulf %18, %22 : vector<8x32xf32>
    %24 = arith.addf %20, %23 : vector<8x32xf32>
    %25 = math.tanh %24 : vector<8x32xf32>
    %cst_6 = arith.constant 1.000000e+00 : f32
    %26 = vector.broadcast %cst_6 : f32 to vector<8x32xf32>
    %27 = arith.subf %26, %19 : vector<8x32xf32>
    %28 = arith.mulf %27, %25 : vector<8x32xf32>
    %29 = arith.mulf %19, %8 : vector<8x32xf32>
    %30 = arith.addf %28, %29 : vector<8x32xf32>
    %31 = vector.extract_strided_slice %5 {offsets = [8, 0], sizes = [8, 128], strides = [1, 1]} : vector<64x128xf32> to vector<8x128xf32>
    %cst_7 = arith.constant dense<0.000000e+00> : vector<8x128xf32>
    %32 = tpu.matmul %30, %2, %cst_7 {dimension_numbers = #tpu.dot_dimension_numbers<[1], [0], [0], [1], [0, 0, 1, 1], [], []>} : vector<8x32xf32>, vector<32x128xf32>, vector<8x128xf32> -> vector<8x128xf32>
    %33 = arith.addf %31, %32 : vector<8x128xf32>
    %34 = vector.extract_strided_slice %33 {offsets = [0, 0], sizes = [8, 64], strides = [1, 1]} : vector<8x128xf32> to vector<8x64xf32>
    %35 = arith.negf %34 : vector<8x64xf32>
    %36 = math.exp %35 : vector<8x64xf32>
    %cst_8 = arith.constant 1.000000e+00 : f32
    %37 = vector.broadcast %cst_8 : f32 to vector<8x64xf32>
    %38 = arith.addf %37, %36 : vector<8x64xf32>
    %39 = arith.divf %37, %38 : vector<8x64xf32>
    %40 = vector.extract_strided_slice %39 {offsets = [0, 0], sizes = [8, 32], strides = [1, 1]} : vector<8x64xf32> to vector<8x32xf32>
    %41 = vector.extract_strided_slice %39 {offsets = [0, 32], sizes = [8, 32], strides = [1, 1]} : vector<8x64xf32> to vector<8x32xf32>
    %42 = vector.extract_strided_slice %31 {offsets = [0, 64], sizes = [8, 32], strides = [1, 1]} : vector<8x128xf32> to vector<8x32xf32>
    %43 = vector.extract_strided_slice %32 {offsets = [0, 64], sizes = [8, 32], strides = [1, 1]} : vector<8x128xf32> to vector<8x32xf32>
    %44 = arith.addf %43, %7 : vector<8x32xf32>
    %45 = arith.mulf %40, %44 : vector<8x32xf32>
    %46 = arith.addf %42, %45 : vector<8x32xf32>
    %47 = math.tanh %46 : vector<8x32xf32>
    %cst_9 = arith.constant 1.000000e+00 : f32
    %48 = vector.broadcast %cst_9 : f32 to vector<8x32xf32>
    %49 = arith.subf %48, %41 : vector<8x32xf32>
    %50 = arith.mulf %49, %47 : vector<8x32xf32>
    %51 = arith.mulf %41, %30 : vector<8x32xf32>
    %52 = arith.addf %50, %51 : vector<8x32xf32>
    %53 = vector.extract_strided_slice %5 {offsets = [16, 0], sizes = [8, 128], strides = [1, 1]} : vector<64x128xf32> to vector<8x128xf32>
    %cst_10 = arith.constant dense<0.000000e+00> : vector<8x128xf32>
    %54 = tpu.matmul %52, %2, %cst_10 {dimension_numbers = #tpu.dot_dimension_numbers<[1], [0], [0], [1], [0, 0, 1, 1], [], []>} : vector<8x32xf32>, vector<32x128xf32>, vector<8x128xf32> -> vector<8x128xf32>
    %55 = arith.addf %53, %54 : vector<8x128xf32>
    %56 = vector.extract_strided_slice %55 {offsets = [0, 0], sizes = [8, 64], strides = [1, 1]} : vector<8x128xf32> to vector<8x64xf32>
    %57 = arith.negf %56 : vector<8x64xf32>
    %58 = math.exp %57 : vector<8x64xf32>
    %cst_11 = arith.constant 1.000000e+00 : f32
    %59 = vector.broadcast %cst_11 : f32 to vector<8x64xf32>
    %60 = arith.addf %59, %58 : vector<8x64xf32>
    %61 = arith.divf %59, %60 : vector<8x64xf32>
    %62 = vector.extract_strided_slice %61 {offsets = [0, 0], sizes = [8, 32], strides = [1, 1]} : vector<8x64xf32> to vector<8x32xf32>
    %63 = vector.extract_strided_slice %61 {offsets = [0, 32], sizes = [8, 32], strides = [1, 1]} : vector<8x64xf32> to vector<8x32xf32>
    %64 = vector.extract_strided_slice %53 {offsets = [0, 64], sizes = [8, 32], strides = [1, 1]} : vector<8x128xf32> to vector<8x32xf32>
    %65 = vector.extract_strided_slice %54 {offsets = [0, 64], sizes = [8, 32], strides = [1, 1]} : vector<8x128xf32> to vector<8x32xf32>
    %66 = arith.addf %65, %7 : vector<8x32xf32>
    %67 = arith.mulf %62, %66 : vector<8x32xf32>
    %68 = arith.addf %64, %67 : vector<8x32xf32>
    %69 = math.tanh %68 : vector<8x32xf32>
    %cst_12 = arith.constant 1.000000e+00 : f32
    %70 = vector.broadcast %cst_12 : f32 to vector<8x32xf32>
    %71 = arith.subf %70, %63 : vector<8x32xf32>
    %72 = arith.mulf %71, %69 : vector<8x32xf32>
    %73 = arith.mulf %63, %52 : vector<8x32xf32>
    %74 = arith.addf %72, %73 : vector<8x32xf32>
    %75 = vector.extract_strided_slice %5 {offsets = [24, 0], sizes = [8, 128], strides = [1, 1]} : vector<64x128xf32> to vector<8x128xf32>
    %cst_13 = arith.constant dense<0.000000e+00> : vector<8x128xf32>
    %76 = tpu.matmul %74, %2, %cst_13 {dimension_numbers = #tpu.dot_dimension_numbers<[1], [0], [0], [1], [0, 0, 1, 1], [], []>} : vector<8x32xf32>, vector<32x128xf32>, vector<8x128xf32> -> vector<8x128xf32>
    %77 = arith.addf %75, %76 : vector<8x128xf32>
    %78 = vector.extract_strided_slice %77 {offsets = [0, 0], sizes = [8, 64], strides = [1, 1]} : vector<8x128xf32> to vector<8x64xf32>
    %79 = arith.negf %78 : vector<8x64xf32>
    %80 = math.exp %79 : vector<8x64xf32>
    %cst_14 = arith.constant 1.000000e+00 : f32
    %81 = vector.broadcast %cst_14 : f32 to vector<8x64xf32>
    %82 = arith.addf %81, %80 : vector<8x64xf32>
    %83 = arith.divf %81, %82 : vector<8x64xf32>
    %84 = vector.extract_strided_slice %83 {offsets = [0, 0], sizes = [8, 32], strides = [1, 1]} : vector<8x64xf32> to vector<8x32xf32>
    %85 = vector.extract_strided_slice %83 {offsets = [0, 32], sizes = [8, 32], strides = [1, 1]} : vector<8x64xf32> to vector<8x32xf32>
    %86 = vector.extract_strided_slice %75 {offsets = [0, 64], sizes = [8, 32], strides = [1, 1]} : vector<8x128xf32> to vector<8x32xf32>
    %87 = vector.extract_strided_slice %76 {offsets = [0, 64], sizes = [8, 32], strides = [1, 1]} : vector<8x128xf32> to vector<8x32xf32>
    %88 = arith.addf %87, %7 : vector<8x32xf32>
    %89 = arith.mulf %84, %88 : vector<8x32xf32>
    %90 = arith.addf %86, %89 : vector<8x32xf32>
    %91 = math.tanh %90 : vector<8x32xf32>
    %cst_15 = arith.constant 1.000000e+00 : f32
    %92 = vector.broadcast %cst_15 : f32 to vector<8x32xf32>
    %93 = arith.subf %92, %85 : vector<8x32xf32>
    %94 = arith.mulf %93, %91 : vector<8x32xf32>
    %95 = arith.mulf %85, %74 : vector<8x32xf32>
    %96 = arith.addf %94, %95 : vector<8x32xf32>
    %97 = vector.extract_strided_slice %5 {offsets = [32, 0], sizes = [8, 128], strides = [1, 1]} : vector<64x128xf32> to vector<8x128xf32>
    %cst_16 = arith.constant dense<0.000000e+00> : vector<8x128xf32>
    %98 = tpu.matmul %96, %2, %cst_16 {dimension_numbers = #tpu.dot_dimension_numbers<[1], [0], [0], [1], [0, 0, 1, 1], [], []>} : vector<8x32xf32>, vector<32x128xf32>, vector<8x128xf32> -> vector<8x128xf32>
    %99 = arith.addf %97, %98 : vector<8x128xf32>
    %100 = vector.extract_strided_slice %99 {offsets = [0, 0], sizes = [8, 64], strides = [1, 1]} : vector<8x128xf32> to vector<8x64xf32>
    %101 = arith.negf %100 : vector<8x64xf32>
    %102 = math.exp %101 : vector<8x64xf32>
    %cst_17 = arith.constant 1.000000e+00 : f32
    %103 = vector.broadcast %cst_17 : f32 to vector<8x64xf32>
    %104 = arith.addf %103, %102 : vector<8x64xf32>
    %105 = arith.divf %103, %104 : vector<8x64xf32>
    %106 = vector.extract_strided_slice %105 {offsets = [0, 0], sizes = [8, 32], strides = [1, 1]} : vector<8x64xf32> to vector<8x32xf32>
    %107 = vector.extract_strided_slice %105 {offsets = [0, 32], sizes = [8, 32], strides = [1, 1]} : vector<8x64xf32> to vector<8x32xf32>
    %108 = vector.extract_strided_slice %97 {offsets = [0, 64], sizes = [8, 32], strides = [1, 1]} : vector<8x128xf32> to vector<8x32xf32>
    %109 = vector.extract_strided_slice %98 {offsets = [0, 64], sizes = [8, 32], strides = [1, 1]} : vector<8x128xf32> to vector<8x32xf32>
    %110 = arith.addf %109, %7 : vector<8x32xf32>
    %111 = arith.mulf %106, %110 : vector<8x32xf32>
    %112 = arith.addf %108, %111 : vector<8x32xf32>
    %113 = math.tanh %112 : vector<8x32xf32>
    %cst_18 = arith.constant 1.000000e+00 : f32
    %114 = vector.broadcast %cst_18 : f32 to vector<8x32xf32>
    %115 = arith.subf %114, %107 : vector<8x32xf32>
    %116 = arith.mulf %115, %113 : vector<8x32xf32>
    %117 = arith.mulf %107, %96 : vector<8x32xf32>
    %118 = arith.addf %116, %117 : vector<8x32xf32>
    %119 = vector.extract_strided_slice %5 {offsets = [40, 0], sizes = [8, 128], strides = [1, 1]} : vector<64x128xf32> to vector<8x128xf32>
    %cst_19 = arith.constant dense<0.000000e+00> : vector<8x128xf32>
    %120 = tpu.matmul %118, %2, %cst_19 {dimension_numbers = #tpu.dot_dimension_numbers<[1], [0], [0], [1], [0, 0, 1, 1], [], []>} : vector<8x32xf32>, vector<32x128xf32>, vector<8x128xf32> -> vector<8x128xf32>
    %121 = arith.addf %119, %120 : vector<8x128xf32>
    %122 = vector.extract_strided_slice %121 {offsets = [0, 0], sizes = [8, 64], strides = [1, 1]} : vector<8x128xf32> to vector<8x64xf32>
    %123 = arith.negf %122 : vector<8x64xf32>
    %124 = math.exp %123 : vector<8x64xf32>
    %cst_20 = arith.constant 1.000000e+00 : f32
    %125 = vector.broadcast %cst_20 : f32 to vector<8x64xf32>
    %126 = arith.addf %125, %124 : vector<8x64xf32>
    %127 = arith.divf %125, %126 : vector<8x64xf32>
    %128 = vector.extract_strided_slice %127 {offsets = [0, 0], sizes = [8, 32], strides = [1, 1]} : vector<8x64xf32> to vector<8x32xf32>
    %129 = vector.extract_strided_slice %127 {offsets = [0, 32], sizes = [8, 32], strides = [1, 1]} : vector<8x64xf32> to vector<8x32xf32>
    %130 = vector.extract_strided_slice %119 {offsets = [0, 64], sizes = [8, 32], strides = [1, 1]} : vector<8x128xf32> to vector<8x32xf32>
    %131 = vector.extract_strided_slice %120 {offsets = [0, 64], sizes = [8, 32], strides = [1, 1]} : vector<8x128xf32> to vector<8x32xf32>
    %132 = arith.addf %131, %7 : vector<8x32xf32>
    %133 = arith.mulf %128, %132 : vector<8x32xf32>
    %134 = arith.addf %130, %133 : vector<8x32xf32>
    %135 = math.tanh %134 : vector<8x32xf32>
    %cst_21 = arith.constant 1.000000e+00 : f32
    %136 = vector.broadcast %cst_21 : f32 to vector<8x32xf32>
    %137 = arith.subf %136, %129 : vector<8x32xf32>
    %138 = arith.mulf %137, %135 : vector<8x32xf32>
    %139 = arith.mulf %129, %118 : vector<8x32xf32>
    %140 = arith.addf %138, %139 : vector<8x32xf32>
    %141 = vector.extract_strided_slice %5 {offsets = [48, 0], sizes = [8, 128], strides = [1, 1]} : vector<64x128xf32> to vector<8x128xf32>
    %cst_22 = arith.constant dense<0.000000e+00> : vector<8x128xf32>
    %142 = tpu.matmul %140, %2, %cst_22 {dimension_numbers = #tpu.dot_dimension_numbers<[1], [0], [0], [1], [0, 0, 1, 1], [], []>} : vector<8x32xf32>, vector<32x128xf32>, vector<8x128xf32> -> vector<8x128xf32>
    %143 = arith.addf %141, %142 : vector<8x128xf32>
    %144 = vector.extract_strided_slice %143 {offsets = [0, 0], sizes = [8, 64], strides = [1, 1]} : vector<8x128xf32> to vector<8x64xf32>
    %145 = arith.negf %144 : vector<8x64xf32>
    %146 = math.exp %145 : vector<8x64xf32>
    %cst_23 = arith.constant 1.000000e+00 : f32
    %147 = vector.broadcast %cst_23 : f32 to vector<8x64xf32>
    %148 = arith.addf %147, %146 : vector<8x64xf32>
    %149 = arith.divf %147, %148 : vector<8x64xf32>
    %150 = vector.extract_strided_slice %149 {offsets = [0, 0], sizes = [8, 32], strides = [1, 1]} : vector<8x64xf32> to vector<8x32xf32>
    %151 = vector.extract_strided_slice %149 {offsets = [0, 32], sizes = [8, 32], strides = [1, 1]} : vector<8x64xf32> to vector<8x32xf32>
    %152 = vector.extract_strided_slice %141 {offsets = [0, 64], sizes = [8, 32], strides = [1, 1]} : vector<8x128xf32> to vector<8x32xf32>
    %153 = vector.extract_strided_slice %142 {offsets = [0, 64], sizes = [8, 32], strides = [1, 1]} : vector<8x128xf32> to vector<8x32xf32>
    %154 = arith.addf %153, %7 : vector<8x32xf32>
    %155 = arith.mulf %150, %154 : vector<8x32xf32>
    %156 = arith.addf %152, %155 : vector<8x32xf32>
    %157 = math.tanh %156 : vector<8x32xf32>
    %cst_24 = arith.constant 1.000000e+00 : f32
    %158 = vector.broadcast %cst_24 : f32 to vector<8x32xf32>
    %159 = arith.subf %158, %151 : vector<8x32xf32>
    %160 = arith.mulf %159, %157 : vector<8x32xf32>
    %161 = arith.mulf %151, %140 : vector<8x32xf32>
    %162 = arith.addf %160, %161 : vector<8x32xf32>
    %163 = vector.extract_strided_slice %5 {offsets = [56, 0], sizes = [8, 128], strides = [1, 1]} : vector<64x128xf32> to vector<8x128xf32>
    %cst_25 = arith.constant dense<0.000000e+00> : vector<8x128xf32>
    %164 = tpu.matmul %162, %2, %cst_25 {dimension_numbers = #tpu.dot_dimension_numbers<[1], [0], [0], [1], [0, 0, 1, 1], [], []>} : vector<8x32xf32>, vector<32x128xf32>, vector<8x128xf32> -> vector<8x128xf32>
    %165 = arith.addf %163, %164 : vector<8x128xf32>
    %166 = vector.extract_strided_slice %165 {offsets = [0, 0], sizes = [8, 64], strides = [1, 1]} : vector<8x128xf32> to vector<8x64xf32>
    %167 = arith.negf %166 : vector<8x64xf32>
    %168 = math.exp %167 : vector<8x64xf32>
    %cst_26 = arith.constant 1.000000e+00 : f32
    %169 = vector.broadcast %cst_26 : f32 to vector<8x64xf32>
    %170 = arith.addf %169, %168 : vector<8x64xf32>
    %171 = arith.divf %169, %170 : vector<8x64xf32>
    %172 = vector.extract_strided_slice %171 {offsets = [0, 0], sizes = [8, 32], strides = [1, 1]} : vector<8x64xf32> to vector<8x32xf32>
    %173 = vector.extract_strided_slice %171 {offsets = [0, 32], sizes = [8, 32], strides = [1, 1]} : vector<8x64xf32> to vector<8x32xf32>
    %174 = vector.extract_strided_slice %163 {offsets = [0, 64], sizes = [8, 32], strides = [1, 1]} : vector<8x128xf32> to vector<8x32xf32>
    %175 = vector.extract_strided_slice %164 {offsets = [0, 64], sizes = [8, 32], strides = [1, 1]} : vector<8x128xf32> to vector<8x32xf32>
    %176 = arith.addf %175, %7 : vector<8x32xf32>
    %177 = arith.mulf %172, %176 : vector<8x32xf32>
    %178 = arith.addf %174, %177 : vector<8x32xf32>
    %179 = math.tanh %178 : vector<8x32xf32>
    %cst_27 = arith.constant 1.000000e+00 : f32
    %180 = vector.broadcast %cst_27 : f32 to vector<8x32xf32>
    %181 = arith.subf %180, %173 : vector<8x32xf32>
    %182 = arith.mulf %181, %179 : vector<8x32xf32>
    %183 = arith.mulf %173, %162 : vector<8x32xf32>
    %184 = arith.addf %182, %183 : vector<8x32xf32>
    %185 = vector.extract_strided_slice %0 {offsets = [48, 0], sizes = [32, 128], strides = [1, 1]} : vector<88x128xf32> to vector<32x128xf32>
    %186 = vector.extract_strided_slice %0 {offsets = [80, 0], sizes = [1, 128], strides = [1, 1]} : vector<88x128xf32> to vector<1x128xf32>
    %187 = vector.extract_strided_slice %0 {offsets = [81, 0], sizes = [1, 128], strides = [1, 1]} : vector<88x128xf32> to vector<1x128xf32>
    %188 = vector.extract_strided_slice %0 {offsets = [82, 0], sizes = [1, 1], strides = [1, 1]} : vector<88x128xf32> to vector<1x1xf32>
    %cst_28 = arith.constant 0.000000e+00 : f32
    %189 = vector.broadcast %cst_28 : f32 to vector<8x32xf32>
    %190 = arith.maximumf %184, %189 : vector<8x32xf32>
    %cst_29 = arith.constant dense<0.000000e+00> : vector<8x128xf32>
    %191 = tpu.matmul %190, %185, %cst_29 {dimension_numbers = #tpu.dot_dimension_numbers<[1], [0], [0], [1], [0, 0, 1, 1], [], []>} : vector<8x32xf32>, vector<32x128xf32>, vector<8x128xf32> -> vector<8x128xf32>
    %192 = vector.broadcast %186 : vector<1x128xf32> to vector<8x128xf32>
    %193 = arith.addf %191, %192 : vector<8x128xf32>
    %cst_30 = arith.constant 0.000000e+00 : f32
    %194 = vector.broadcast %cst_30 : f32 to vector<8x128xf32>
    %195 = arith.maximumf %193, %194 : vector<8x128xf32>
    %196 = vector.broadcast %187 : vector<1x128xf32> to vector<8x128xf32>
    %197 = arith.mulf %195, %196 : vector<8x128xf32>
    %cst_31 = arith.constant dense<0.000000e+00> : vector<8xf32>
    %198 = vector.multi_reduction <add>, %197, %cst_31 [1] : vector<8x128xf32> to vector<8xf32>
    %199 = vector.shape_cast %198 : vector<8xf32> to vector<8x1xf32>
    %200 = vector.broadcast %188 : vector<1x1xf32> to vector<8x1xf32>
    %201 = arith.addf %199, %200 : vector<8x1xf32>
    %c0_32 = arith.constant 0 : index
    %c0_33 = arith.constant 0 : index
    %202 = vector.load %arg2[%c0_32, %c0_33] : memref<8x1xf32, #tpu.memory_space<vmem>>, vector<8x1xf32>
    tpu.vector_store %arg2[%c0_32, %c0_33], %201 {strides = array<i32>} : memref<8x1xf32, #tpu.memory_space<vmem>>, vector<8x1xf32>,
    return
  }
}

</mosaic_0001>

<llo_original>
// kernel: gru_net_forward.2
$region0: #{gru_net_forward.2}
  #allocation0 [shape = 'u32[]', space=smem, size = 0x4, offset = 0x4, fixed_abs, tag = 'smem constant byte address 0x4 - core index']
  #allocation1 [shape = 'u32[144,128]{1,0:T(1,128)}', space=vmem, size = 0x12000, scoped, tag = 'internal scratch']
  %s0 = inlined_call_operand.vmem [shape: f32[88,128], index: 0, kind: input, shape index: {}]
  %s1 = inlined_call_operand.vmem [shape: f32[8,8,8], index: 1, kind: input, shape index: {}]
  %s2 = inlined_call_operand.vmem [shape: f32[8,1], index: 2, kind: output, shape index: {}]
  %s3 = sld [smem:[#allocation0]]
  $region18: #{gru_net_forward.2} parent=0
    _
  %s5 = ssub.s32 1, %s3
  %s6 = scalar_select 0, %s5, %s3
  $region1: #{gru_net_forward.2} parent=0
    #allocation2 [shape = 'u8[32768]{0}', space=vmem, size = 0x8000, dematerialized = true, scoped, tag = 'FusionAdapter Buffer %fusion.2 = f32[64,8]{1,0:T(8,128)} fusion(%param_1.8), kind=kLoop, calls=%fused_computation.4.clone, metadata={op_name="jit(gru_net_forward)/reshape" stack_frame_id=11}']
    // Predicated region
    $region2: #{gru_net_forward.2} parent=1 // pred_check
      _
    $region3: #{gru_net_forward.2} parent=1 // pred_check_branch
      %8 = sbr.rel (0) target = $region5
    $region4: #{gru_net_forward.2} parent=1 // pred_region
      _
    $region5: #{gru_net_forward.2} parent=1 // pred_fallthru
      _
    // Predicated region
    $region6: #{gru_net_forward.2} parent=1 // pred_check
      _
    $region7: #{gru_net_forward.2} parent=1 // pred_check_branch
      %10 = sbr.rel (0) target = $region9
    $region8: #{gru_net_forward.2} parent=1 // pred_region
      _
    $region9: #{gru_net_forward.2} parent=1 // pred_fallthru
      _
    %v11 = vld [vmem:[%s1] sm:$0xff]
    %s13 = ssub.s32 256, 1
    %14 = vst [vmem:[#allocation2] sm:%s13] %v11
    %s15 = scalar_lea.vmem %s1, 8
    %v16 = vld [vmem:[%s15] sm:$0xff]
    %s17 = scalar_lea.vmem [#allocation2], 8
    %s19 = ssub.s32 256, 1
    %20 = vst [vmem:[%s17] sm:%s19] %v16
    %s21 = scalar_lea.vmem %s1, 16
    %v22 = vld [vmem:[%s21] sm:$0xff]
    %s23 = scalar_lea.vmem [#allocation2], 16
    %s25 = ssub.s32 256, 1
    %26 = vst [vmem:[%s23] sm:%s25] %v22
    %s27 = scalar_lea.vmem %s1, 24
    %v28 = vld [vmem:[%s27] sm:$0xff]
    %s29 = scalar_lea.vmem [#allocation2], 24
    %s31 = ssub.s32 256, 1
    %32 = vst [vmem:[%s29] sm:%s31] %v28
    %s33 = scalar_lea.vmem %s1, 32
    %v34 = vld [vmem:[%s33] sm:$0xff]
    %s35 = scalar_lea.vmem [#allocation2], 32
    %s37 = ssub.s32 256, 1
    %38 = vst [vmem:[%s35] sm:%s37] %v34
    %s39 = scalar_lea.vmem %s1, 40
    %v40 = vld [vmem:[%s39] sm:$0xff]
    %s41 = scalar_lea.vmem [#allocation2], 40
    %s43 = ssub.s32 256, 1
    %44 = vst [vmem:[%s41] sm:%s43] %v40
    %s45 = scalar_lea.vmem %s1, 48
    %v46 = vld [vmem:[%s45] sm:$0xff]
    %s47 = scalar_lea.vmem [#allocation2], 48
    %s49 = ssub.s32 256, 1
    %50 = vst [vmem:[%s47] sm:%s49] %v46
    %s51 = scalar_lea.vmem %s1, 56
    %v52 = vld [vmem:[%s51] sm:$0xff]
    %s53 = scalar_lea.vmem [#allocation2], 56
    %s55 = ssub.s32 256, 1
    %56 = vst [vmem:[%s53] sm:%s55] %v52
    %v57 = vld [vmem:[%s0] sm:$0xff]
    %v58 = vld [vmem:[%s0 + $0x8] sm:$0xff]
    %v59 = vld [vmem:[%s0 + $0x10] sm:$0xff]
    %v60 = vld [vmem:[%s0 + $0x18] sm:$0xff]
    %v61 = vld [vmem:[%s0 + $0x20] sm:$0xff]
    %v62 = vld [vmem:[%s0 + $0x28] sm:$0xff]
    %v63 = vld [vmem:[%s0 + $0x30] sm:$0xff]
    %v64 = vld [vmem:[%s0 + $0x38] sm:$0xff]
    %v65 = vld [vmem:[%s0 + $0x40] sm:$0xff]
    %v66 = vld [vmem:[%s0 + $0x48] sm:$0xff]
    %v67 = vld [vmem:[%s0 + $0x50] sm:$0xff]
    %v68 = vld [vmem:[#allocation2] sm:$0xff]
    %v69 = vld [vmem:[#allocation2 + $0x8] sm:$0xff]
    %v70 = vld [vmem:[#allocation2 + $0x10] sm:$0xff]
    %v71 = vld [vmem:[#allocation2 + $0x18] sm:$0xff]
    %v72 = vld [vmem:[#allocation2 + $0x20] sm:$0xff]
    %v73 = vld [vmem:[#allocation2 + $0x28] sm:$0xff]
    %v74 = vld [vmem:[#allocation2 + $0x30] sm:$0xff]
    %v75 = vld [vmem:[#allocation2 + $0x38] sm:$0xff]
    %vm76 = vcmask 64512
    %v78 = vsel %vm76, %v68, 0
    %v81 = vsel %vm76, %v69, 0
    %v84 = vsel %vm76, %v70, 0
    %v87 = vsel %vm76, %v71, 0
    %v90 = vsel %vm76, %v72, 0
    %v93 = vsel %vm76, %v73, 0
    %v96 = vsel %vm76, %v74, 0
    %v99 = vsel %vm76, %v75, 0
    %101 = vmatprep.subr.mxu0 0.0
    %102 = vmatpush1.msra.mxu0 0.0
    %103 = vmatprep.subr.mxu0 0.0
    %104 = vmatpush1.msra.mxu0 0.0
    %105 = vmatprep.subr.mxu0 0.0
    %106 = vmatpush1.msra.mxu0 0.0
    %107 = vmatprep.subr.mxu0 0.0
    %108 = vmatpush1.msra.mxu0 0.0
    %109 = vmatprep.subr.mxu0 0.0
    %110 = vmatpush1.msra.mxu0 0.0
    %111 = vmatprep.subr.mxu0 0.0
    %112 = vmatpush1.msra.mxu0 0.0
    %113 = vmatprep.subr.mxu0 0.0
    %114 = vmatpush1.msra.mxu0 0.0
    %115 = vmatprep.subr.mxu0 0.0
    %116 = vmatpush1.msra.mxu0 0.0
    %117 = vmatprep.subr.mxu0 0.0
    %118 = vmatpush1.msra.mxu0 0.0
    %119 = vmatprep.subr.mxu0 0.0
    %120 = vmatpush1.msra.mxu0 0.0
    %121 = vmatprep.subr.mxu0 0.0
    %122 = vmatpush1.msra.mxu0 0.0
    %123 = vmatprep.subr.mxu0 0.0
    %124 = vmatpush1.msra.mxu0 0.0
    %125 = vmatprep.subr.mxu0 0.0
    %126 = vmatpush1.msra.mxu0 0.0
    %127 = vmatprep.subr.mxu0 0.0
    %128 = vmatpush1.msra.mxu0 0.0
    %129 = vmatprep.subr.mxu0 0.0
    %130 = vmatpush1.msra.mxu0 0.0
    %131 = vmatprep.subr.mxu0 0.0
    %132 = vmatpush1.msra.mxu0 %v57
    %133 = vmatprep.subr.mxu0 0.0
    %134 = vmatpush2.msra.mxu0 0.0
    %135 = vmatprep.subr.mxu0 0.0
    %136 = vmatpush2.msra.mxu0 0.0
    %137 = vmatprep.subr.mxu0 0.0
    %138 = vmatpush2.msra.mxu0 0.0
    %139 = vmatprep.subr.mxu0 0.0
    %140 = vmatpush2.msra.mxu0 0.0
    %141 = vmatprep.subr.mxu0 0.0
    %142 = vmatpush2.msra.mxu0 0.0
    %143 = vmatprep.subr.mxu0 0.0
    %144 = vmatpush2.msra.mxu0 0.0
    %145 = vmatprep.subr.mxu0 0.0
    %146 = vmatpush2.msra.mxu0 0.0
    %147 = vmatprep.subr.mxu0 0.0
    %148 = vmatpush2.msra.mxu0 0.0
    %149 = vmatprep.subr.mxu0 0.0
    %150 = vmatpush2.msra.mxu0 0.0
    %151 = vmatprep.subr.mxu0 0.0
    %152 = vmatpush2.msra.mxu0 0.0
    %153 = vmatprep.subr.mxu0 0.0
    %154 = vmatpush2.msra.mxu0 0.0
    %155 = vmatprep.subr.mxu0 0.0
    %156 = vmatpush2.msra.mxu0 0.0
    %157 = vmatprep.subr.mxu0 0.0
    %158 = vmatpush2.msra.mxu0 0.0
    %159 = vmatprep.subr.mxu0 0.0
    %160 = vmatpush2.msra.mxu0 0.0
    %161 = vmatprep.subr.mxu0 0.0
    %162 = vmatpush2.msra.mxu0 0.0
    %163 = vmatprep.subr.mxu0 0.0
    %164 = vmatpush2.msra.mxu0 0.0
    %165 = vmatprep.mubr.f32.mxu0 0.0
    %166 = vmatmul.mubr.f32.gmra.mxu0 %v78
    %v167 = vpop.f32.mrf.mxu0
    %v168 = vadd.f32 0.0, %v167
    %v169 = vpop.f32.mrf.mxu0
    %170 = vmatprep.mubr.f32.mxu0 0.0
    %171 = vmatmul.mubr.f32.gmra.mxu0 %v81
    %v172 = vpop.f32.mrf.mxu0
    %v173 = vadd.f32 0.0, %v172
    %v174 = vpop.f32.mrf.mxu0
    %175 = vmatprep.mubr.f32.mxu0 0.0
    %176 = vmatmul.mubr.f32.gmra.mxu0 %v84
    %v177 = vpop.f32.mrf.mxu0
    %v178 = vadd.f32 0.0, %v177
    %v179 = vpop.f32.mrf.mxu0
    %180 = vmatprep.mubr.f32.mxu0 0.0
    %181 = vmatmul.mubr.f32.gmra.mxu0 %v87
    %v182 = vpop.f32.mrf.mxu0
    %v183 = vadd.f32 0.0, %v182
    %v184 = vpop.f32.mrf.mxu0
    %185 = vmatprep.mubr.f32.mxu0 0.0
    %186 = vmatmul.mubr.f32.gmra.mxu0 %v90
    %v187 = vpop.f32.mrf.mxu0
    %v188 = vadd.f32 0.0, %v187
    %v189 = vpop.f32.mrf.mxu0
    %190 = vmatprep.mubr.f32.mxu0 0.0
    %191 = vmatmul.mubr.f32.gmra.mxu0 %v93
    %v192 = vpop.f32.mrf.mxu0
    %v193 = vadd.f32 0.0, %v192
    %v194 = vpop.f32.mrf.mxu0
    %195 = vmatprep.mubr.f32.mxu0 0.0
    %196 = vmatmul.mubr.f32.gmra.mxu0 %v96
    %v197 = vpop.f32.mrf.mxu0
    %v198 = vadd.f32 0.0, %v197
    %v199 = vpop.f32.mrf.mxu0
    %200 = vmatprep.mubr.f32.mxu0 0.0
    %201 = vmatmul.mubr.f32.gmra.mxu0 %v99
    %v202 = vpop.f32.mrf.mxu0
    %v203 = vadd.f32 0.0, %v202
    %v204 = vpop.f32.mrf.mxu0
    %205 = vdwg.mxu0
    %v206 = vlaneseq
    %v207 = vshrl.u32 %v206, 7
    %v208 = vsub.s32 0, %v207
    %v209 = vrot.slane %v62, %v208
    %vm210 = vcmask 261120
    %v212 = vsel %vm210, 0.0, 0
    %214 = vmatprep.subr.mxu0 0.0
    %215 = vmatpush1.msra.mxu0 0.0
    %216 = vmatprep.subr.mxu0 0.0
    %217 = vmatpush1.msra.mxu0 0.0
    %218 = vmatprep.subr.mxu0 0.0
    %219 = vmatpush1.msra.mxu0 0.0
    %220 = vmatprep.subr.mxu0 0.0
    %221 = vmatpush1.msra.mxu0 0.0
    %222 = vmatprep.subr.mxu0 0.0
    %223 = vmatpush1.msra.mxu0 0.0
    %224 = vmatprep.subr.mxu0 0.0
    %225 = vmatpush1.msra.mxu0 0.0
    %226 = vmatprep.subr.mxu0 0.0
    %227 = vmatpush1.msra.mxu0 0.0
    %228 = vmatprep.subr.mxu0 0.0
    %229 = vmatpush1.msra.mxu0 0.0
    %230 = vmatprep.subr.mxu0 0.0
    %231 = vmatpush1.msra.mxu0 0.0
    %232 = vmatprep.subr.mxu0 0.0
    %233 = vmatpush1.msra.mxu0 0.0
    %234 = vmatprep.subr.mxu0 0.0
    %235 = vmatpush1.msra.mxu0 0.0
    %236 = vmatprep.subr.mxu0 0.0
    %237 = vmatpush1.msra.mxu0 0.0
    %238 = vmatprep.subr.mxu0 0.0
    %239 = vmatpush1.msra.mxu0 %v61
    %240 = vmatprep.subr.mxu0 0.0
    %241 = vmatpush1.msra.mxu0 %v60
    %242 = vmatprep.subr.mxu0 0.0
    %243 = vmatpush1.msra.mxu0 %v59
    %244 = vmatprep.subr.mxu0 0.0
    %245 = vmatpush1.msra.mxu0 %v58
    %246 = vmatprep.subr.mxu0 0.0
    %247 = vmatpush2.msra.mxu0 0.0
    %248 = vmatprep.subr.mxu0 0.0
    %249 = vmatpush2.msra.mxu0 0.0
    %250 = vmatprep.subr.mxu0 0.0
    %251 = vmatpush2.msra.mxu0 0.0
    %252 = vmatprep.subr.mxu0 0.0
    %253 = vmatpush2.msra.mxu0 0.0
    %254 = vmatprep.subr.mxu0 0.0
    %255 = vmatpush2.msra.mxu0 0.0
    %256 = vmatprep.subr.mxu0 0.0
    %257 = vmatpush2.msra.mxu0 0.0
    %258 = vmatprep.subr.mxu0 0.0
    %259 = vmatpush2.msra.mxu0 0.0
    %260 = vmatprep.subr.mxu0 0.0
    %261 = vmatpush2.msra.mxu0 0.0
    %262 = vmatprep.subr.mxu0 0.0
    %263 = vmatpush2.msra.mxu0 0.0
    %264 = vmatprep.subr.mxu0 0.0
    %265 = vmatpush2.msra.mxu0 0.0
    %266 = vmatprep.subr.mxu0 0.0
    %267 = vmatpush2.msra.mxu0 0.0
    %268 = vmatprep.subr.mxu0 0.0
    %269 = vmatpush2.msra.mxu0 0.0
    %270 = vmatprep.subr.mxu0 0.0
    %271 = vmatpush2.msra.mxu0 0.0
    %272 = vmatprep.subr.mxu0 0.0
    %273 = vmatpush2.msra.mxu0 0.0
    %274 = vmatprep.subr.mxu0 0.0
    %275 = vmatpush2.msra.mxu0 0.0
    %276 = vmatprep.subr.mxu0 0.0
    %277 = vmatpush2.msra.mxu0 0.0
    %278 = vmatprep.mubr.f32.mxu0 0.0
    %279 = vmatmul.mubr.f32.gmra.mxu0 %v212
    %v280 = vpop.f32.mrf.mxu0
    %v281 = vadd.f32 0.0, %v280
    %v282 = vpop.f32.mrf.mxu0
    %283 = vdwg.mxu0
    %v284 = vadd.f32 %v168, %v281
    %v285 = vxor.u32 %v284, 2147483648
    %v286 = vmul.f32 %v285, 1.442695
    %v287 = vpow.pop %v286
    %v288 = vadd.f32 %v287, 1.0
    %v289 = vrcp.pop %v288
    %v290 = vmul.f32 1.0, %v289
    %v291 = vadd.f32 %v281, %v209
    %293 = vrot.lane.b32.xlu0 %v291, 64
    %v294 = vpop.permute.xlu0 %293
    %v296 = vmul.f32 %v290, %v294
    %298 = vrot.lane.b32.xlu0 %v296, 64
    %v299 = vpop.permute.xlu0 %298
    %v301 = vadd.f32 %v168, %v299
    %v302 = vtanh.pop %v301
    %v303 = vsub.f32 1.0, %v290
    %305 = vrot.lane.b32.xlu0 %v302, 96
    %v306 = vpop.permute.xlu0 %305
    %v308 = vmul.f32 %v303, %v306
    %v309 = vmul.f32 %v290, 0.0
    %v310 = vadd.f32 %v308, %v309
    %312 = vrot.lane.b32.xlu0 %v310, 96
    %v313 = vpop.permute.xlu0 %312
    %v314 = vsel %vm210, %v313, 0
    %316 = vmatprep.subr.mxu0 0.0
    %317 = vmatpush1.msra.mxu0 0.0
    %318 = vmatprep.subr.mxu0 0.0
    %319 = vmatpush1.msra.mxu0 0.0
    %320 = vmatprep.subr.mxu0 0.0
    %321 = vmatpush1.msra.mxu0 0.0
    %322 = vmatprep.subr.mxu0 0.0
    %323 = vmatpush1.msra.mxu0 0.0
    %324 = vmatprep.subr.mxu0 0.0
    %325 = vmatpush1.msra.mxu0 0.0
    %326 = vmatprep.subr.mxu0 0.0
    %327 = vmatpush1.msra.mxu0 0.0
    %328 = vmatprep.subr.mxu0 0.0
    %329 = vmatpush1.msra.mxu0 0.0
    %330 = vmatprep.subr.mxu0 0.0
    %331 = vmatpush1.msra.mxu0 0.0
    %332 = vmatprep.subr.mxu0 0.0
    %333 = vmatpush1.msra.mxu0 0.0
    %334 = vmatprep.subr.mxu0 0.0
    %335 = vmatpush1.msra.mxu0 0.0
    %336 = vmatprep.subr.mxu0 0.0
    %337 = vmatpush1.msra.mxu0 0.0
    %338 = vmatprep.subr.mxu0 0.0
    %339 = vmatpush1.msra.mxu0 0.0
    %340 = vmatprep.subr.mxu0 0.0
    %341 = vmatpush1.msra.mxu0 %v61
    %342 = vmatprep.subr.mxu0 0.0
    %343 = vmatpush1.msra.mxu0 %v60
    %344 = vmatprep.subr.mxu0 0.0
    %345 = vmatpush1.msra.mxu0 %v59
    %346 = vmatprep.subr.mxu0 0.0
    %347 = vmatpush1.msra.mxu0 %v58
    %348 = vmatprep.subr.mxu0 0.0
    %349 = vmatpush2.msra.mxu0 0.0
    %350 = vmatprep.subr.mxu0 0.0
    %351 = vmatpush2.msra.mxu0 0.0
    %352 = vmatprep.subr.mxu0 0.0
    %353 = vmatpush2.msra.mxu0 0.0
    %354 = vmatprep.subr.mxu0 0.0
    %355 = vmatpush2.msra.mxu0 0.0
    %356 = vmatprep.subr.mxu0 0.0
    %357 = vmatpush2.msra.mxu0 0.0
    %358 = vmatprep.subr.mxu0 0.0
    %359 = vmatpush2.msra.mxu0 0.0
    %360 = vmatprep.subr.mxu0 0.0
    %361 = vmatpush2.msra.mxu0 0.0
    %362 = vmatprep.subr.mxu0 0.0
    %363 = vmatpush2.msra.mxu0 0.0
    %364 = vmatprep.subr.mxu0 0.0
    %365 = vmatpush2.msra.mxu0 0.0
    %366 = vmatprep.subr.mxu0 0.0
    %367 = vmatpush2.msra.mxu0 0.0
    %368 = vmatprep.subr.mxu0 0.0
    %369 = vmatpush2.msra.mxu0 0.0
    %370 = vmatprep.subr.mxu0 0.0
    %371 = vmatpush2.msra.mxu0 0.0
    %372 = vmatprep.subr.mxu0 0.0
    %373 = vmatpush2.msra.mxu0 0.0
    %374 = vmatprep.subr.mxu0 0.0
    %375 = vmatpush2.msra.mxu0 0.0
    %376 = vmatprep.subr.mxu0 0.0
    %377 = vmatpush2.msra.mxu0 0.0
    %378 = vmatprep.subr.mxu0 0.0
    %379 = vmatpush2.msra.mxu0 0.0
    %380 = vmatprep.mubr.f32.mxu0 0.0
    %381 = vmatmul.mubr.f32.gmra.mxu0 %v314
    %v382 = vpop.f32.mrf.mxu0
    %v383 = vadd.f32 0.0, %v382
    %v384 = vpop.f32.mrf.mxu0
    %385 = vdwg.mxu0
    %v386 = vadd.f32 %v173, %v383
    %v387 = vxor.u32 %v386, 2147483648
    %v388 = vmul.f32 %v387, 1.442695
    %v389 = vpow.pop %v388
    %v390 = vadd.f32 %v389, 1.0
    %v391 = vrcp.pop %v390
    %v392 = vmul.f32 1.0, %v391
    %v393 = vadd.f32 %v383, %v209
    %395 = vrot.lane.b32.xlu0 %v393, 64
    %v396 = vpop.permute.xlu0 %395
    %v398 = vmul.f32 %v392, %v396
    %400 = vrot.lane.b32.xlu0 %v398, 64
    %v401 = vpop.permute.xlu0 %400
    %v403 = vadd.f32 %v173, %v401
    %v404 = vtanh.pop %v403
    %v405 = vsub.f32 1.0, %v392
    %407 = vrot.lane.b32.xlu0 %v404, 96
    %v408 = vpop.permute.xlu0 %407
    %v410 = vmul.f32 %v405, %v408
    %v411 = vmul.f32 %v392, %v310
    %v412 = vadd.f32 %v410, %v411
    %414 = vrot.lane.b32.xlu0 %v412, 96
    %v415 = vpop.permute.xlu0 %414
    %v416 = vsel %vm210, %v415, 0
    %418 = vmatprep.subr.mxu0 0.0
    %419 = vmatpush1.msra.mxu0 0.0
    %420 = vmatprep.subr.mxu0 0.0
    %421 = vmatpush1.msra.mxu0 0.0
    %422 = vmatprep.subr.mxu0 0.0
    %423 = vmatpush1.msra.mxu0 0.0
    %424 = vmatprep.subr.mxu0 0.0
    %425 = vmatpush1.msra.mxu0 0.0
    %426 = vmatprep.subr.mxu0 0.0
    %427 = vmatpush1.msra.mxu0 0.0
    %428 = vmatprep.subr.mxu0 0.0
    %429 = vmatpush1.msra.mxu0 0.0
    %430 = vmatprep.subr.mxu0 0.0
    %431 = vmatpush1.msra.mxu0 0.0
    %432 = vmatprep.subr.mxu0 0.0
    %433 = vmatpush1.msra.mxu0 0.0
    %434 = vmatprep.subr.mxu0 0.0
    %435 = vmatpush1.msra.mxu0 0.0
    %436 = vmatprep.subr.mxu0 0.0
    %437 = vmatpush1.msra.mxu0 0.0
    %438 = vmatprep.subr.mxu0 0.0
    %439 = vmatpush1.msra.mxu0 0.0
    %440 = vmatprep.subr.mxu0 0.0
    %441 = vmatpush1.msra.mxu0 0.0
    %442 = vmatprep.subr.mxu0 0.0
    %443 = vmatpush1.msra.mxu0 %v61
    %444 = vmatprep.subr.mxu0 0.0
    %445 = vmatpush1.msra.mxu0 %v60
    %446 = vmatprep.subr.mxu0 0.0
    %447 = vmatpush1.msra.mxu0 %v59
    %448 = vmatprep.subr.mxu0 0.0
    %449 = vmatpush1.msra.mxu0 %v58
    %450 = vmatprep.subr.mxu0 0.0
    %451 = vmatpush2.msra.mxu0 0.0
    %452 = vmatprep.subr.mxu0 0.0
    %453 = vmatpush2.msra.mxu0 0.0
    %454 = vmatprep.subr.mxu0 0.0
    %455 = vmatpush2.msra.mxu0 0.0
    %456 = vmatprep.subr.mxu0 0.0
    %457 = vmatpush2.msra.mxu0 0.0
    %458 = vmatprep.subr.mxu0 0.0
    %459 = vmatpush2.msra.mxu0 0.0
    %460 = vmatprep.subr.mxu0 0.0
    %461 = vmatpush2.msra.mxu0 0.0
    %462 = vmatprep.subr.mxu0 0.0
    %463 = vmatpush2.msra.mxu0 0.0
    %464 = vmatprep.subr.mxu0 0.0
    %465 = vmatpush2.msra.mxu0 0.0
    %466 = vmatprep.subr.mxu0 0.0
    %467 = vmatpush2.msra.mxu0 0.0
    %468 = vmatprep.subr.mxu0 0.0
    %469 = vmatpush2.msra.mxu0 0.0
    %470 = vmatprep.subr.mxu0 0.0
    %471 = vmatpush2.msra.mxu0 0.0
    %472 = vmatprep.subr.mxu0 0.0
    %473 = vmatpush2.msra.mxu0 0.0
    %474 = vmatprep.subr.mxu0 0.0
    %475 = vmatpush2.msra.mxu0 0.0
    %476 = vmatprep.subr.mxu0 0.0
    %477 = vmatpush2.msra.mxu0 0.0
    %478 = vmatprep.subr.mxu0 0.0
    %479 = vmatpush2.msra.mxu0 0.0
    %480 = vmatprep.subr.mxu0 0.0
    %481 = vmatpush2.msra.mxu0 0.0
    %482 = vmatprep.mubr.f32.mxu0 0.0
    %483 = vmatmul.mubr.f32.gmra.mxu0 %v416
    %v484 = vpop.f32.mrf.mxu0
    %v485 = vadd.f32 0.0, %v484
    %v486 = vpop.f32.mrf.mxu0
    %487 = vdwg.mxu0
    %v488 = vadd.f32 %v178, %v485
    %v489 = vxor.u32 %v488, 2147483648
    %v490 = vmul.f32 %v489, 1.442695
    %v491 = vpow.pop %v490
    %v492 = vadd.f32 %v491, 1.0
    %v493 = vrcp.pop %v492
    %v494 = vmul.f32 1.0, %v493
    %v495 = vadd.f32 %v485, %v209
    %497 = vrot.lane.b32.xlu0 %v495, 64
    %v498 = vpop.permute.xlu0 %497
    %v500 = vmul.f32 %v494, %v498
    %502 = vrot.lane.b32.xlu0 %v500, 64
    %v503 = vpop.permute.xlu0 %502
    %v505 = vadd.f32 %v178, %v503
    %v506 = vtanh.pop %v505
    %v507 = vsub.f32 1.0, %v494
    %509 = vrot.lane.b32.xlu0 %v506, 96
    %v510 = vpop.permute.xlu0 %509
    %v512 = vmul.f32 %v507, %v510
    %v513 = vmul.f32 %v494, %v412
    %v514 = vadd.f32 %v512, %v513
    %516 = vrot.lane.b32.xlu0 %v514, 96
    %v517 = vpop.permute.xlu0 %516
    %v518 = vsel %vm210, %v517, 0
    %520 = vmatprep.subr.mxu0 0.0
    %521 = vmatpush1.msra.mxu0 0.0
    %522 = vmatprep.subr.mxu0 0.0
    %523 = vmatpush1.msra.mxu0 0.0
    %524 = vmatprep.subr.mxu0 0.0
    %525 = vmatpush1.msra.mxu0 0.0
    %526 = vmatprep.subr.mxu0 0.0
    %527 = vmatpush1.msra.mxu0 0.0
    %528 = vmatprep.subr.mxu0 0.0
    %529 = vmatpush1.msra.mxu0 0.0
    %530 = vmatprep.subr.mxu0 0.0
    %531 = vmatpush1.msra.mxu0 0.0
    %532 = vmatprep.subr.mxu0 0.0
    %533 = vmatpush1.msra.mxu0 0.0
    %534 = vmatprep.subr.mxu0 0.0
    %535 = vmatpush1.msra.mxu0 0.0
    %536 = vmatprep.subr.mxu0 0.0
    %537 = vmatpush1.msra.mxu0 0.0
    %538 = vmatprep.subr.mxu0 0.0
    %539 = vmatpush1.msra.mxu0 0.0
    %540 = vmatprep.subr.mxu0 0.0
    %541 = vmatpush1.msra.mxu0 0.0
    %542 = vmatprep.subr.mxu0 0.0
    %543 = vmatpush1.msra.mxu0 0.0
    %544 = vmatprep.subr.mxu0 0.0
    %545 = vmatpush1.msra.mxu0 %v61
    %546 = vmatprep.subr.mxu0 0.0
    %547 = vmatpush1.msra.mxu0 %v60
    %548 = vmatprep.subr.mxu0 0.0
    %549 = vmatpush1.msra.mxu0 %v59
    %550 = vmatprep.subr.mxu0 0.0
    %551 = vmatpush1.msra.mxu0 %v58
    %552 = vmatprep.subr.mxu0 0.0
    %553 = vmatpush2.msra.mxu0 0.0
    %554 = vmatprep.subr.mxu0 0.0
    %555 = vmatpush2.msra.mxu0 0.0
    %556 = vmatprep.subr.mxu0 0.0
    %557 = vmatpush2.msra.mxu0 0.0
    %558 = vmatprep.subr.mxu0 0.0
    %559 = vmatpush2.msra.mxu0 0.0
    %560 = vmatprep.subr.mxu0 0.0
    %561 = vmatpush2.msra.mxu0 0.0
    %562 = vmatprep.subr.mxu0 0.0
    %563 = vmatpush2.msra.mxu0 0.0
    %564 = vmatprep.subr.mxu0 0.0
    %565 = vmatpush2.msra.mxu0 0.0
    %566 = vmatprep.subr.mxu0 0.0
    %567 = vmatpush2.msra.mxu0 0.0
    %568 = vmatprep.subr.mxu0 0.0
    %569 = vmatpush2.msra.mxu0 0.0
    %570 = vmatprep.subr.mxu0 0.0
    %571 = vmatpush2.msra.mxu0 0.0
    %572 = vmatprep.subr.mxu0 0.0
    %573 = vmatpush2.msra.mxu0 0.0
    %574 = vmatprep.subr.mxu0 0.0
    %575 = vmatpush2.msra.mxu0 0.0
    %576 = vmatprep.subr.mxu0 0.0
    %577 = vmatpush2.msra.mxu0 0.0
    %578 = vmatprep.subr.mxu0 0.0
    %579 = vmatpush2.msra.mxu0 0.0
    %580 = vmatprep.subr.mxu0 0.0
    %581 = vmatpush2.msra.mxu0 0.0
    %582 = vmatprep.subr.mxu0 0.0
    %583 = vmatpush2.msra.mxu0 0.0
    %584 = vmatprep.mubr.f32.mxu0 0.0
    %585 = vmatmul.mubr.f32.gmra.mxu0 %v518
    %v586 = vpop.f32.mrf.mxu0
    %v587 = vadd.f32 0.0, %v586
    %v588 = vpop.f32.mrf.mxu0
    %589 = vdwg.mxu0
    %v590 = vadd.f32 %v183, %v587
    %v591 = vxor.u32 %v590, 2147483648
    %v592 = vmul.f32 %v591, 1.442695
    %v593 = vpow.pop %v592
    %v594 = vadd.f32 %v593, 1.0
    %v595 = vrcp.pop %v594
    %v596 = vmul.f32 1.0, %v595
    %v597 = vadd.f32 %v587, %v209
    %599 = vrot.lane.b32.xlu0 %v597, 64
    %v600 = vpop.permute.xlu0 %599
    %v602 = vmul.f32 %v596, %v600
    %604 = vrot.lane.b32.xlu0 %v602, 64
    %v605 = vpop.permute.xlu0 %604
    %v607 = vadd.f32 %v183, %v605
    %v608 = vtanh.pop %v607
    %v609 = vsub.f32 1.0, %v596
    %611 = vrot.lane.b32.xlu0 %v608, 96
    %v612 = vpop.permute.xlu0 %611
    %v614 = vmul.f32 %v609, %v612
    %v615 = vmul.f32 %v596, %v514
    %v616 = vadd.f32 %v614, %v615
    %618 = vrot.lane.b32.xlu0 %v616, 96
    %v619 = vpop.permute.xlu0 %618
    %v620 = vsel %vm210, %v619, 0
    %622 = vmatprep.subr.mxu0 0.0
    %623 = vmatpush1.msra.mxu0 0.0
    %624 = vmatprep.subr.mxu0 0.0
    %625 = vmatpush1.msra.mxu0 0.0
    %626 = vmatprep.subr.mxu0 0.0
    %627 = vmatpush1.msra.mxu0 0.0
    %628 = vmatprep.subr.mxu0 0.0
    %629 = vmatpush1.msra.mxu0 0.0
    %630 = vmatprep.subr.mxu0 0.0
    %631 = vmatpush1.msra.mxu0 0.0
    %632 = vmatprep.subr.mxu0 0.0
    %633 = vmatpush1.msra.mxu0 0.0
    %634 = vmatprep.subr.mxu0 0.0
    %635 = vmatpush1.msra.mxu0 0.0
    %636 = vmatprep.subr.mxu0 0.0
    %637 = vmatpush1.msra.mxu0 0.0
    %638 = vmatprep.subr.mxu0 0.0
    %639 = vmatpush1.msra.mxu0 0.0
    %640 = vmatprep.subr.mxu0 0.0
    %641 = vmatpush1.msra.mxu0 0.0
    %642 = vmatprep.subr.mxu0 0.0
    %643 = vmatpush1.msra.mxu0 0.0
    %644 = vmatprep.subr.mxu0 0.0
    %645 = vmatpush1.msra.mxu0 0.0
    %646 = vmatprep.subr.mxu0 0.0
    %647 = vmatpush1.msra.mxu0 %v61
    %648 = vmatprep.subr.mxu0 0.0
    %649 = vmatpush1.msra.mxu0 %v60
    %650 = vmatprep.subr.mxu0 0.0
    %651 = vmatpush1.msra.mxu0 %v59
    %652 = vmatprep.subr.mxu0 0.0
    %653 = vmatpush1.msra.mxu0 %v58
    %654 = vmatprep.subr.mxu0 0.0
    %655 = vmatpush2.msra.mxu0 0.0
    %656 = vmatprep.subr.mxu0 0.0
    %657 = vmatpush2.msra.mxu0 0.0
    %658 = vmatprep.subr.mxu0 0.0
    %659 = vmatpush2.msra.mxu0 0.0
    %660 = vmatprep.subr.mxu0 0.0
    %661 = vmatpush2.msra.mxu0 0.0
    %662 = vmatprep.subr.mxu0 0.0
    %663 = vmatpush2.msra.mxu0 0.0
    %664 = vmatprep.subr.mxu0 0.0
    %665 = vmatpush2.msra.mxu0 0.0
    %666 = vmatprep.subr.mxu0 0.0
    %667 = vmatpush2.msra.mxu0 0.0
    %668 = vmatprep.subr.mxu0 0.0
    %669 = vmatpush2.msra.mxu0 0.0
    %670 = vmatprep.subr.mxu0 0.0
    %671 = vmatpush2.msra.mxu0 0.0
    %672 = vmatprep.subr.mxu0 0.0
    %673 = vmatpush2.msra.mxu0 0.0
    %674 = vmatprep.subr.mxu0 0.0
    %675 = vmatpush2.msra.mxu0 0.0
    %676 = vmatprep.subr.mxu0 0.0
    %677 = vmatpush2.msra.mxu0 0.0
    %678 = vmatprep.subr.mxu0 0.0
    %679 = vmatpush2.msra.mxu0 0.0
    %680 = vmatprep.subr.mxu0 0.0
    %681 = vmatpush2.msra.mxu0 0.0
    %682 = vmatprep.subr.mxu0 0.0
    %683 = vmatpush2.msra.mxu0 0.0
    %684 = vmatprep.subr.mxu0 0.0
    %685 = vmatpush2.msra.mxu0 0.0
    %686 = vmatprep.mubr.f32.mxu0 0.0
    %687 = vmatmul.mubr.f32.gmra.mxu0 %v620
    %v688 = vpop.f32.mrf.mxu0
    %v689 = vadd.f32 0.0, %v688
    %v690 = vpop.f32.mrf.mxu0
    %691 = vdwg.mxu0
    %v692 = vadd.f32 %v188, %v689
    %v693 = vxor.u32 %v692, 2147483648
    %v694 = vmul.f32 %v693, 1.442695
    %v695 = vpow.pop %v694
    %v696 = vadd.f32 %v695, 1.0
    %v697 = vrcp.pop %v696
    %v698 = vmul.f32 1.0, %v697
    %v699 = vadd.f32 %v689, %v209
    %701 = vrot.lane.b32.xlu0 %v699, 64
    %v702 = vpop.permute.xlu0 %701
    %v704 = vmul.f32 %v698, %v702
    %706 = vrot.lane.b32.xlu0 %v704, 64
    %v707 = vpop.permute.xlu0 %706
    %v709 = vadd.f32 %v188, %v707
    %v710 = vtanh.pop %v709
    %v711 = vsub.f32 1.0, %v698
    %713 = vrot.lane.b32.xlu0 %v710, 96
    %v714 = vpop.permute.xlu0 %713
    %v716 = vmul.f32 %v711, %v714
    %v717 = vmul.f32 %v698, %v616
    %v718 = vadd.f32 %v716, %v717
    %720 = vrot.lane.b32.xlu0 %v718, 96
    %v721 = vpop.permute.xlu0 %720
    %v722 = vsel %vm210, %v721, 0
    %724 = vmatprep.subr.mxu0 0.0
    %725 = vmatpush1.msra.mxu0 0.0
    %726 = vmatprep.subr.mxu0 0.0
    %727 = vmatpush1.msra.mxu0 0.0
    %728 = vmatprep.subr.mxu0 0.0
    %729 = vmatpush1.msra.mxu0 0.0
    %730 = vmatprep.subr.mxu0 0.0
    %731 = vmatpush1.msra.mxu0 0.0
    %732 = vmatprep.subr.mxu0 0.0
    %733 = vmatpush1.msra.mxu0 0.0
    %734 = vmatprep.subr.mxu0 0.0
    %735 = vmatpush1.msra.mxu0 0.0
    %736 = vmatprep.subr.mxu0 0.0
    %737 = vmatpush1.msra.mxu0 0.0
    %738 = vmatprep.subr.mxu0 0.0
    %739 = vmatpush1.msra.mxu0 0.0
    %740 = vmatprep.subr.mxu0 0.0
    %741 = vmatpush1.msra.mxu0 0.0
    %742 = vmatprep.subr.mxu0 0.0
    %743 = vmatpush1.msra.mxu0 0.0
    %744 = vmatprep.subr.mxu0 0.0
    %745 = vmatpush1.msra.mxu0 0.0
    %746 = vmatprep.subr.mxu0 0.0
    %747 = vmatpush1.msra.mxu0 0.0
    %748 = vmatprep.subr.mxu0 0.0
    %749 = vmatpush1.msra.mxu0 %v61
    %750 = vmatprep.subr.mxu0 0.0
    %751 = vmatpush1.msra.mxu0 %v60
    %752 = vmatprep.subr.mxu0 0.0
    %753 = vmatpush1.msra.mxu0 %v59
    %754 = vmatprep.subr.mxu0 0.0
    %755 = vmatpush1.msra.mxu0 %v58
    %756 = vmatprep.subr.mxu0 0.0
    %757 = vmatpush2.msra.mxu0 0.0
    %758 = vmatprep.subr.mxu0 0.0
    %759 = vmatpush2.msra.mxu0 0.0
    %760 = vmatprep.subr.mxu0 0.0
    %761 = vmatpush2.msra.mxu0 0.0
    %762 = vmatprep.subr.mxu0 0.0
    %763 = vmatpush2.msra.mxu0 0.0
    %764 = vmatprep.subr.mxu0 0.0
    %765 = vmatpush2.msra.mxu0 0.0
    %766 = vmatprep.subr.mxu0 0.0
    %767 = vmatpush2.msra.mxu0 0.0
    %768 = vmatprep.subr.mxu0 0.0
    %769 = vmatpush2.msra.mxu0 0.0
    %770 = vmatprep.subr.mxu0 0.0
    %771 = vmatpush2.msra.mxu0 0.0
    %772 = vmatprep.subr.mxu0 0.0
    %773 = vmatpush2.msra.mxu0 0.0
    %774 = vmatprep.subr.mxu0 0.0
    %775 = vmatpush2.msra.mxu0 0.0
    %776 = vmatprep.subr.mxu0 0.0
    %777 = vmatpush2.msra.mxu0 0.0
    %778 = vmatprep.subr.mxu0 0.0
    %779 = vmatpush2.msra.mxu0 0.0
    %780 = vmatprep.subr.mxu0 0.0
    %781 = vmatpush2.msra.mxu0 0.0
    %782 = vmatprep.subr.mxu0 0.0
    %783 = vmatpush2.msra.mxu0 0.0
    %784 = vmatprep.subr.mxu0 0.0
    %785 = vmatpush2.msra.mxu0 0.0
    %786 = vmatprep.subr.mxu0 0.0
    %787 = vmatpush2.msra.mxu0 0.0
    %788 = vmatprep.mubr.f32.mxu0 0.0
    %789 = vmatmul.mubr.f32.gmra.mxu0 %v722
    %v790 = vpop.f32.mrf.mxu0
    %v791 = vadd.f32 0.0, %v790
    %v792 = vpop.f32.mrf.mxu0
    %793 = vdwg.mxu0
    %v794 = vadd.f32 %v193, %v791
    %v795 = vxor.u32 %v794, 2147483648
    %v796 = vmul.f32 %v795, 1.442695
    %v797 = vpow.pop %v796
    %v798 = vadd.f32 %v797, 1.0
    %v799 = vrcp.pop %v798
    %v800 = vmul.f32 1.0, %v799
    %v801 = vadd.f32 %v791, %v209
    %803 = vrot.lane.b32.xlu0 %v801, 64
    %v804 = vpop.permute.xlu0 %803
    %v806 = vmul.f32 %v800, %v804
    %808 = vrot.lane.b32.xlu0 %v806, 64
    %v809 = vpop.permute.xlu0 %808
    %v811 = vadd.f32 %v193, %v809
    %v812 = vtanh.pop %v811
    %v813 = vsub.f32 1.0, %v800
    %815 = vrot.lane.b32.xlu0 %v812, 96
    %v816 = vpop.permute.xlu0 %815
    %v818 = vmul.f32 %v813, %v816
    %v819 = vmul.f32 %v800, %v718
    %v820 = vadd.f32 %v818, %v819
    %822 = vrot.lane.b32.xlu0 %v820, 96
    %v823 = vpop.permute.xlu0 %822
    %v824 = vsel %vm210, %v823, 0
    %826 = vmatprep.subr.mxu0 0.0
    %827 = vmatpush1.msra.mxu0 0.0
    %828 = vmatprep.subr.mxu0 0.0
    %829 = vmatpush1.msra.mxu0 0.0
    %830 = vmatprep.subr.mxu0 0.0
    %831 = vmatpush1.msra.mxu0 0.0
    %832 = vmatprep.subr.mxu0 0.0
    %833 = vmatpush1.msra.mxu0 0.0
    %834 = vmatprep.subr.mxu0 0.0
    %835 = vmatpush1.msra.mxu0 0.0
    %836 = vmatprep.subr.mxu0 0.0
    %837 = vmatpush1.msra.mxu0 0.0
    %838 = vmatprep.subr.mxu0 0.0
    %839 = vmatpush1.msra.mxu0 0.0
    %840 = vmatprep.subr.mxu0 0.0
    %841 = vmatpush1.msra.mxu0 0.0
    %842 = vmatprep.subr.mxu0 0.0
    %843 = vmatpush1.msra.mxu0 0.0
    %844 = vmatprep.subr.mxu0 0.0
    %845 = vmatpush1.msra.mxu0 0.0
    %846 = vmatprep.subr.mxu0 0.0
    %847 = vmatpush1.msra.mxu0 0.0
    %848 = vmatprep.subr.mxu0 0.0
    %849 = vmatpush1.msra.mxu0 0.0
    %850 = vmatprep.subr.mxu0 0.0
    %851 = vmatpush1.msra.mxu0 %v61
    %852 = vmatprep.subr.mxu0 0.0
    %853 = vmatpush1.msra.mxu0 %v60
    %854 = vmatprep.subr.mxu0 0.0
    %855 = vmatpush1.msra.mxu0 %v59
    %856 = vmatprep.subr.mxu0 0.0
    %857 = vmatpush1.msra.mxu0 %v58
    %858 = vmatprep.subr.mxu0 0.0
    %859 = vmatpush2.msra.mxu0 0.0
    %860 = vmatprep.subr.mxu0 0.0
    %861 = vmatpush2.msra.mxu0 0.0
    %862 = vmatprep.subr.mxu0 0.0
    %863 = vmatpush2.msra.mxu0 0.0
    %864 = vmatprep.subr.mxu0 0.0
    %865 = vmatpush2.msra.mxu0 0.0
    %866 = vmatprep.subr.mxu0 0.0
    %867 = vmatpush2.msra.mxu0 0.0
    %868 = vmatprep.subr.mxu0 0.0
    %869 = vmatpush2.msra.mxu0 0.0
    %870 = vmatprep.subr.mxu0 0.0
    %871 = vmatpush2.msra.mxu0 0.0
    %872 = vmatprep.subr.mxu0 0.0
    %873 = vmatpush2.msra.mxu0 0.0
    %874 = vmatprep.subr.mxu0 0.0
    %875 = vmatpush2.msra.mxu0 0.0
    %876 = vmatprep.subr.mxu0 0.0
    %877 = vmatpush2.msra.mxu0 0.0
    %878 = vmatprep.subr.mxu0 0.0
    %879 = vmatpush2.msra.mxu0 0.0
    %880 = vmatprep.subr.mxu0 0.0
    %881 = vmatpush2.msra.mxu0 0.0
    %882 = vmatprep.subr.mxu0 0.0
    %883 = vmatpush2.msra.mxu0 0.0
    %884 = vmatprep.subr.mxu0 0.0
    %885 = vmatpush2.msra.mxu0 0.0
    %886 = vmatprep.subr.mxu0 0.0
    %887 = vmatpush2.msra.mxu0 0.0
    %888 = vmatprep.subr.mxu0 0.0
    %889 = vmatpush2.msra.mxu0 0.0
    %890 = vmatprep.mubr.f32.mxu0 0.0
    %891 = vmatmul.mubr.f32.gmra.mxu0 %v824
    %v892 = vpop.f32.mrf.mxu0
    %v893 = vadd.f32 0.0, %v892
    %v894 = vpop.f32.mrf.mxu0
    %895 = vdwg.mxu0
    %v896 = vadd.f32 %v198, %v893
    %v897 = vxor.u32 %v896, 2147483648
    %v898 = vmul.f32 %v897, 1.442695
    %v899 = vpow.pop %v898
    %v900 = vadd.f32 %v899, 1.0
    %v901 = vrcp.pop %v900
    %v902 = vmul.f32 1.0, %v901
    %v903 = vadd.f32 %v893, %v209
    %905 = vrot.lane.b32.xlu0 %v903, 64
    %v906 = vpop.permute.xlu0 %905
    %v908 = vmul.f32 %v902, %v906
    %910 = vrot.lane.b32.xlu0 %v908, 64
    %v911 = vpop.permute.xlu0 %910
    %v913 = vadd.f32 %v198, %v911
    %v914 = vtanh.pop %v913
    %v915 = vsub.f32 1.0, %v902
    %917 = vrot.lane.b32.xlu0 %v914, 96
    %v918 = vpop.permute.xlu0 %917
    %v920 = vmul.f32 %v915, %v918
    %v921 = vmul.f32 %v902, %v820
    %v922 = vadd.f32 %v920, %v921
    %924 = vrot.lane.b32.xlu0 %v922, 96
    %v925 = vpop.permute.xlu0 %924
    %v926 = vsel %vm210, %v925, 0
    %928 = vmatprep.subr.mxu0 0.0
    %929 = vmatpush1.msra.mxu0 0.0
    %930 = vmatprep.subr.mxu0 0.0
    %931 = vmatpush1.msra.mxu0 0.0
    %932 = vmatprep.subr.mxu0 0.0
    %933 = vmatpush1.msra.mxu0 0.0
    %934 = vmatprep.subr.mxu0 0.0
    %935 = vmatpush1.msra.mxu0 0.0
    %936 = vmatprep.subr.mxu0 0.0
    %937 = vmatpush1.msra.mxu0 0.0
    %938 = vmatprep.subr.mxu0 0.0
    %939 = vmatpush1.msra.mxu0 0.0
    %940 = vmatprep.subr.mxu0 0.0
    %941 = vmatpush1.msra.mxu0 0.0
    %942 = vmatprep.subr.mxu0 0.0
    %943 = vmatpush1.msra.mxu0 0.0
    %944 = vmatprep.subr.mxu0 0.0
    %945 = vmatpush1.msra.mxu0 0.0
    %946 = vmatprep.subr.mxu0 0.0
    %947 = vmatpush1.msra.mxu0 0.0
    %948 = vmatprep.subr.mxu0 0.0
    %949 = vmatpush1.msra.mxu0 0.0
    %950 = vmatprep.subr.mxu0 0.0
    %951 = vmatpush1.msra.mxu0 0.0
    %952 = vmatprep.subr.mxu0 0.0
    %953 = vmatpush1.msra.mxu0 %v61
    %954 = vmatprep.subr.mxu0 0.0
    %955 = vmatpush1.msra.mxu0 %v60
    %956 = vmatprep.subr.mxu0 0.0
    %957 = vmatpush1.msra.mxu0 %v59
    %958 = vmatprep.subr.mxu0 0.0
    %959 = vmatpush1.msra.mxu0 %v58
    %960 = vmatprep.subr.mxu0 0.0
    %961 = vmatpush2.msra.mxu0 0.0
    %962 = vmatprep.subr.mxu0 0.0
    %963 = vmatpush2.msra.mxu0 0.0
    %964 = vmatprep.subr.mxu0 0.0
    %965 = vmatpush2.msra.mxu0 0.0
    %966 = vmatprep.subr.mxu0 0.0
    %967 = vmatpush2.msra.mxu0 0.0
    %968 = vmatprep.subr.mxu0 0.0
    %969 = vmatpush2.msra.mxu0 0.0
    %970 = vmatprep.subr.mxu0 0.0
    %971 = vmatpush2.msra.mxu0 0.0
    %972 = vmatprep.subr.mxu0 0.0
    %973 = vmatpush2.msra.mxu0 0.0
    %974 = vmatprep.subr.mxu0 0.0
    %975 = vmatpush2.msra.mxu0 0.0
    %976 = vmatprep.subr.mxu0 0.0
    %977 = vmatpush2.msra.mxu0 0.0
    %978 = vmatprep.subr.mxu0 0.0
    %979 = vmatpush2.msra.mxu0 0.0
    %980 = vmatprep.subr.mxu0 0.0
    %981 = vmatpush2.msra.mxu0 0.0
    %982 = vmatprep.subr.mxu0 0.0
    %983 = vmatpush2.msra.mxu0 0.0
    %984 = vmatprep.subr.mxu0 0.0
    %985 = vmatpush2.msra.mxu0 0.0
    %986 = vmatprep.subr.mxu0 0.0
    %987 = vmatpush2.msra.mxu0 0.0
    %988 = vmatprep.subr.mxu0 0.0
    %989 = vmatpush2.msra.mxu0 0.0
    %990 = vmatprep.subr.mxu0 0.0
    %991 = vmatpush2.msra.mxu0 0.0
    %992 = vmatprep.mubr.f32.mxu0 0.0
    %993 = vmatmul.mubr.f32.gmra.mxu0 %v926
    %v994 = vpop.f32.mrf.mxu0
    %v995 = vadd.f32 0.0, %v994
    %v996 = vpop.f32.mrf.mxu0
    %997 = vdwg.mxu0
    %v998 = vadd.f32 %v203, %v995
    %v999 = vxor.u32 %v998, 2147483648
    %v1000 = vmul.f32 %v999, 1.442695
    %v1001 = vpow.pop %v1000
    %v1002 = vadd.f32 %v1001, 1.0
    %v1003 = vrcp.pop %v1002
    %v1004 = vmul.f32 1.0, %v1003
    %v1005 = vadd.f32 %v995, %v209
    %1007 = vrot.lane.b32.xlu0 %v1005, 64
    %v1008 = vpop.permute.xlu0 %1007
    %v1010 = vmul.f32 %v1004, %v1008
    %1012 = vrot.lane.b32.xlu0 %v1010, 64
    %v1013 = vpop.permute.xlu0 %1012
    %v1015 = vadd.f32 %v203, %v1013
    %v1016 = vtanh.pop %v1015
    %v1017 = vsub.f32 1.0, %v1004
    %1019 = vrot.lane.b32.xlu0 %v1016, 96
    %v1020 = vpop.permute.xlu0 %1019
    %v1022 = vmul.f32 %v1017, %v1020
    %v1023 = vmul.f32 %v1004, %v922
    %v1024 = vadd.f32 %v1022, %v1023
    %v1025 = vmax.f32 %v1024, 0.0
    %v1026 = vlaneseq
    %v1027 = vshrl.u32 %v1026, 7
    %v1028 = vsub.s32 0, %v1027
    %v1029 = vrot.slane %v67, %v1028
    %1031 = vrot.lane.b32.xlu0 %v1025, 96
    %v1032 = vpop.permute.xlu0 %1031
    %v1033 = vsel %vm210, %v1032, 0
    %1035 = vmatprep.subr.mxu0 0.0
    %1036 = vmatpush1.msra.mxu0 0.0
    %1037 = vmatprep.subr.mxu0 0.0
    %1038 = vmatpush1.msra.mxu0 0.0
    %1039 = vmatprep.subr.mxu0 0.0
    %1040 = vmatpush1.msra.mxu0 0.0
    %1041 = vmatprep.subr.mxu0 0.0
    %1042 = vmatpush1.msra.mxu0 0.0
    %1043 = vmatprep.subr.mxu0 0.0
    %1044 = vmatpush1.msra.mxu0 0.0
    %1045 = vmatprep.subr.mxu0 0.0
    %1046 = vmatpush1.msra.mxu0 0.0
    %1047 = vmatprep.subr.mxu0 0.0
    %1048 = vmatpush1.msra.mxu0 0.0
    %1049 = vmatprep.subr.mxu0 0.0
    %1050 = vmatpush1.msra.mxu0 0.0
    %1051 = vmatprep.subr.mxu0 0.0
    %1052 = vmatpush1.msra.mxu0 0.0
    %1053 = vmatprep.subr.mxu0 0.0
    %1054 = vmatpush1.msra.mxu0 0.0
    %1055 = vmatprep.subr.mxu0 0.0
    %1056 = vmatpush1.msra.mxu0 0.0
    %1057 = vmatprep.subr.mxu0 0.0
    %1058 = vmatpush1.msra.mxu0 0.0
    %1059 = vmatprep.subr.mxu0 0.0
    %1060 = vmatpush1.msra.mxu0 %v66
    %1061 = vmatprep.subr.mxu0 0.0
    %1062 = vmatpush1.msra.mxu0 %v65
    %1063 = vmatprep.subr.mxu0 0.0
    %1064 = vmatpush1.msra.mxu0 %v64
    %1065 = vmatprep.subr.mxu0 0.0
    %1066 = vmatpush1.msra.mxu0 %v63
    %1067 = vmatprep.subr.mxu0 0.0
    %1068 = vmatpush2.msra.mxu0 0.0
    %1069 = vmatprep.subr.mxu0 0.0
    %1070 = vmatpush2.msra.mxu0 0.0
    %1071 = vmatprep.subr.mxu0 0.0
    %1072 = vmatpush2.msra.mxu0 0.0
    %1073 = vmatprep.subr.mxu0 0.0
    %1074 = vmatpush2.msra.mxu0 0.0
    %1075 = vmatprep.subr.mxu0 0.0
    %1076 = vmatpush2.msra.mxu0 0.0
    %1077 = vmatprep.subr.mxu0 0.0
    %1078 = vmatpush2.msra.mxu0 0.0
    %1079 = vmatprep.subr.mxu0 0.0
    %1080 = vmatpush2.msra.mxu0 0.0
    %1081 = vmatprep.subr.mxu0 0.0
    %1082 = vmatpush2.msra.mxu0 0.0
    %1083 = vmatprep.subr.mxu0 0.0
    %1084 = vmatpush2.msra.mxu0 0.0
    %1085 = vmatprep.subr.mxu0 0.0
    %1086 = vmatpush2.msra.mxu0 0.0
    %1087 = vmatprep.subr.mxu0 0.0
    %1088 = vmatpush2.msra.mxu0 0.0
    %1089 = vmatprep.subr.mxu0 0.0
    %1090 = vmatpush2.msra.mxu0 0.0
    %1091 = vmatprep.subr.mxu0 0.0
    %1092 = vmatpush2.msra.mxu0 0.0
    %1093 = vmatprep.subr.mxu0 0.0
    %1094 = vmatpush2.msra.mxu0 0.0
    %1095 = vmatprep.subr.mxu0 0.0
    %1096 = vmatpush2.msra.mxu0 0.0
    %1097 = vmatprep.subr.mxu0 0.0
    %1098 = vmatpush2.msra.mxu0 0.0
    %1099 = vmatprep.mubr.f32.mxu0 0.0
    %1100 = vmatmul.mubr.f32.gmra.mxu0 %v1033
    %v1101 = vpop.f32.mrf.mxu0
    %v1102 = vadd.f32 %v1029, %v1101
    %v1103 = vpop.f32.mrf.mxu0
    %1104 = vdwg.mxu0
    %v1105 = vmax.f32 %v1102, 0.0
    %v1106 = vlaneseq
    %v1107 = vshrl.u32 %v1106, 7
    %v1108 = vsub.s32 1, %v1107
    %v1109 = vrot.slane %v67, %v1108
    %v1110 = vmul.f32 %v1105, %v1109
    %1111 = vadd.xlane.f32.xlu0 %v1110
    %v1112 = vpop.xlane.xlu0 %1111
    %v1113 = vlaneseq
    %v1114 = vshrl.u32 %v1113, 7
    %v1115 = vsub.s32 2, %v1114
    %v1116 = vrot.slane %v67, %v1115
    %v1117 = vadd.f32 %v1112, %v1116
    %vm1118 = vcmask 7168
    %1119 = vst.msk [vmem:[%s2] sm:$0xff] %vm1118, %v1117
    // Predicated region
    $region10: #{gru_net_forward.2} parent=1 // pred_check
      _
    $region11: #{gru_net_forward.2} parent=1 // pred_check_branch
      %1121 = sbr.rel (0) target = $region13
    $region12: #{gru_net_forward.2} parent=1 // pred_region
      _
    $region13: #{gru_net_forward.2} parent=1 // pred_fallthru
      _
    // Predicated region
    $region14: #{gru_net_forward.2} parent=1 // pred_check
      _
    $region15: #{gru_net_forward.2} parent=1 // pred_check_branch
      %1123 = sbr.rel (0) target = $region17
    $region16: #{gru_net_forward.2} parent=1 // pred_region
      _
    $region17: #{gru_net_forward.2} parent=1 // pred_fallthru
      _

</llo_original>
